<compile_context>
chip_gen: v7x
topology: tpu7x:2x2x1
jax: 0.10.0
libtpu: 0.0.40
codegen_flags: <defaults>
</compile_context>

<pallas_src>
import jax
import jax.numpy as jnp
from jax.experimental import pallas as pl
from jax.experimental.pallas import tpu as pltpu


def _round_up(x: int, m: int) -> int:
    return ((x + m - 1) // m) * m


def discriminator_kernel(x_ref, w1_ref, b1_ref, w2_ref, b2_ref, o_ref):
    # x_ref : [n_in_p, TB]   batch on lanes, features on sublanes
    # w1_ref: [H_p, n_in_p]  torch [out, in] layout
    # b1_ref: [H_p, 1]
    # w2_ref: [H_p, 1]
    # b2_ref: [1, 1]         scalar in SMEM
    # o_ref : [1, TB]        lane-dense output
    h = jnp.dot(w1_ref[...], x_ref[...], preferred_element_type=jnp.float32)
    h = jnp.tanh(h + b1_ref[...])                      # VPU add + EUP tanh
    # Second layer as VPU multiply + sublane reduction (avoids N=1 MXU matmul,
    # result is naturally lane-dense).
    out = jnp.sum(h * w2_ref[...], axis=0, keepdims=True) + b2_ref[0, 0]
    o_ref[...] = out.astype(o_ref.dtype)


def discriminator_forward(x, w1, b1, w2, b2):
    """Linear(n_in, H) -> Tanh -> Linear(H, 1), torch parameter layouts.

    x : [B, n_inputs]
    w1: [H, n_inputs]   b1: [H]
    w2: [1, H]          b2: [1]
    returns [B, 1]
    """
    B, n_in = x.shape
    H = w1.shape[0]
    dtype = x.dtype

    # Pad feature dims to the sublane granule (8); batch (lane axis) is padded
    # to the batch-tile width (multiple of 128) so stores are full-width vsts.
    n_in_p = _round_up(n_in, 8)
    H_p = _round_up(H, 8)
    TB = min(512, _round_up(B, 128))     # batch tile on the lane axis
    B_p = _round_up(B, TB)

    # Layout plumbing in the wrapper (one-time): batch on lanes, zero padding
    # (padded H rows are killed by w2 padding == 0, padded K rows contribute 0).
    x_t = jnp.zeros((n_in_p, B_p), dtype).at[:n_in, :B].set(x.T)
    w1_p = jnp.zeros((H_p, n_in_p), w1.dtype).at[:H, :n_in].set(w1)
    b1_c = jnp.zeros((H_p, 1), b1.dtype).at[:H, 0].set(b1)
    w2_c = jnp.zeros((H_p, 1), w2.dtype).at[:H, 0].set(w2[0, :])
    b2_s = jnp.asarray(b2, dtype).reshape(1, 1)

    out = pl.pallas_call(
        discriminator_kernel,
        out_shape=jax.ShapeDtypeStruct((1, B_p), dtype),
        grid=(B_p // TB,),
        in_specs=[
            pl.BlockSpec((n_in_p, TB), lambda i: (0, i)),        # x: streamed
            pl.BlockSpec((H_p, n_in_p), lambda i: (0, 0)),       # w1: resident
            pl.BlockSpec((H_p, 1), lambda i: (0, 0)),            # b1: resident
            pl.BlockSpec((H_p, 1), lambda i: (0, 0)),            # w2: resident
            pl.BlockSpec(memory_space=pltpu.MemorySpace.SMEM),   # b2: SMEM scalar
        ],
        out_specs=pl.BlockSpec((1, TB), lambda i: (0, i)),        # lane-dense out
        compiler_params=pltpu.CompilerParams(
            dimension_semantics=("parallel",),      # independent batch tiles (v7x 2 TC)
            vmem_limit_bytes=32 * 1024 * 1024,      # sized for v7x's smaller VMEM too
        ),
    )(x_t, w1_p, b1_c, w2_c, b2_s)

    return out[0, :B].reshape(B, 1)


if __name__ == "__main__":
    # Small shapes consistent with the module's forward: x is [batch, n_inputs].
    batch, n_inputs, hidden = 8, 16, 32

    key = jax.random.PRNGKey(0)
    kx, kw1, kb1, kw2, kb2 = jax.random.split(key, 5)

    x = jax.random.normal(kx, (batch, n_inputs), dtype=jnp.float32)

    # Torch-style parameter layouts: nn.Linear weight is [out_features, in_features].
    bound1 = 1.0 / (n_inputs ** 0.5)
    bound2 = 1.0 / (hidden ** 0.5)
    w1 = jax.random.uniform(kw1, (hidden, n_inputs), jnp.float32, -bound1, bound1)
    b1 = jax.random.uniform(kb1, (hidden,), jnp.float32, -bound1, bound1)
    w2 = jax.random.uniform(kw2, (1, hidden), jnp.float32, -bound2, bound2)
    b2 = jax.random.uniform(kb2, (1,), jnp.float32, -bound2, bound2)

    out = discriminator_forward(x, w1, b1, w2, b2)
    out = jax.block_until_ready(out)

    # Pure-JAX reference (same math as the torch module).
    ref = jnp.dot(jnp.tanh(jnp.dot(x, w1.T) + b1), w2.T) + b2
    assert out.shape == (batch, 1)
    assert jnp.allclose(out, ref, atol=1e-5, rtol=1e-5)

    print("KERNEL_OK")
</pallas_src>

<mosaic_0001>
module attributes {stable_mosaic.version = 11 : i64} {
  func.func @discriminator_kernel(%arg0: i32, %arg1: memref<16x128xf32, #tpu.memory_space<vmem>>, %arg2: memref<32x16xf32, #tpu.memory_space<vmem>>, %arg3: memref<32x1xf32, #tpu.memory_space<vmem>>, %arg4: memref<32x1xf32, #tpu.memory_space<vmem>>, %arg5: memref<1x1xf32, #tpu.memory_space<smem>>, %arg6: memref<1x128xf32, #tpu.memory_space<vmem>>) attributes {dimension_semantics = [#tpu.dimension_semantics<parallel>], iteration_bounds = array<i64: 1>, scalar_prefetch = 0 : i64, scratch_operands = 0 : i64, tpu.core_type = #tpu.core_type<tc>, window_params = [{transform_indices = @transform_0, window_bounds = array<i64: 16, 128>}, {pipeline_mode = #tpu.pipeline_mode<synchronous>, transform_indices = @transform_1, window_bounds = array<i64: 32, 16>}, {pipeline_mode = #tpu.pipeline_mode<synchronous>, transform_indices = @transform_2, window_bounds = array<i64: 32, 1>}, {pipeline_mode = #tpu.pipeline_mode<synchronous>, transform_indices = @transform_3, window_bounds = array<i64: 32, 1>}, {transform_indices = @transform_4, window_bounds = array<i64: 1, 1>}, {transform_indices = @transform_5, window_bounds = array<i64: 1, 128>}]} {
    %c0 = arith.constant 0 : index
    %c0_0 = arith.constant 0 : index
    %0 = vector.load %arg2[%c0, %c0_0] : memref<32x16xf32, #tpu.memory_space<vmem>>, vector<32x16xf32>
    %c0_1 = arith.constant 0 : index
    %c0_2 = arith.constant 0 : index
    %1 = vector.load %arg1[%c0_1, %c0_2] : memref<16x128xf32, #tpu.memory_space<vmem>>, vector<16x128xf32>
    %cst = arith.constant dense<0.000000e+00> : vector<32x128xf32>
    %2 = tpu.matmul %0, %1, %cst {dimension_numbers = #tpu.dot_dimension_numbers<[1], [0], [0], [1], [0, 0, 1, 1], [], []>} : vector<32x16xf32>, vector<16x128xf32>, vector<32x128xf32> -> vector<32x128xf32>
    %c0_3 = arith.constant 0 : index
    %c0_4 = arith.constant 0 : index
    %3 = vector.load %arg3[%c0_3, %c0_4] : memref<32x1xf32, #tpu.memory_space<vmem>>, vector<32x1xf32>
    %4 = vector.broadcast %3 : vector<32x1xf32> to vector<32x128xf32>
    %5 = arith.addf %2, %4 : vector<32x128xf32>
    %6 = math.tanh %5 : vector<32x128xf32>
    %c0_5 = arith.constant 0 : index
    %c0_6 = arith.constant 0 : index
    %7 = vector.load %arg4[%c0_5, %c0_6] : memref<32x1xf32, #tpu.memory_space<vmem>>, vector<32x1xf32>
    %8 = vector.broadcast %7 : vector<32x1xf32> to vector<32x128xf32>
    %9 = arith.mulf %6, %8 : vector<32x128xf32>
    %cst_7 = arith.constant dense<0.000000e+00> : vector<128xf32>
    %10 = vector.multi_reduction <add>, %9, %cst_7 [0] : vector<32x128xf32> to vector<128xf32>
    %11 = vector.shape_cast %10 : vector<128xf32> to vector<1x128xf32>
    %c0_8 = arith.constant 0 : index
    %c0_9 = arith.constant 0 : index
    %12 = memref.load %arg5[%c0_8, %c0_9] : memref<1x1xf32, #tpu.memory_space<smem>>
    %13 = vector.broadcast %12 : f32 to vector<1x128xf32>
    %14 = arith.addf %11, %13 : vector<1x128xf32>
    %c0_10 = arith.constant 0 : index
    %c0_11 = arith.constant 0 : index
    %15 = vector.load %arg6[%c0_10, %c0_11] : memref<1x128xf32, #tpu.memory_space<vmem>>, vector<1x128xf32>
    tpu.vector_store %arg6[%c0_10, %c0_11], %14 {strides = array<i32>} : memref<1x128xf32, #tpu.memory_space<vmem>>, vector<1x128xf32>,
    return
  }
  func.func @transform_0(%arg0: i32) -> (i32, i32) {
    %c0_i32 = arith.constant 0 : i32
    %c0_i32_0 = arith.constant 0 : i32
    return %c0_i32, %arg0 : i32, i32
  }
  func.func @transform_1(%arg0: i32) -> (i32, i32) {
    %c0_i32 = arith.constant 0 : i32
    %c0_i32_0 = arith.constant 0 : i32
    %c0_i32_1 = arith.constant 0 : i32
    return %c0_i32, %c0_i32_0 : i32, i32
  }
  func.func @transform_2(%arg0: i32) -> (i32, i32) {
    %c0_i32 = arith.constant 0 : i32
    %c0_i32_0 = arith.constant 0 : i32
    %c0_i32_1 = arith.constant 0 : i32
    return %c0_i32, %c0_i32_0 : i32, i32
  }
  func.func @transform_3(%arg0: i32) -> (i32, i32) {
    %c0_i32 = arith.constant 0 : i32
    %c0_i32_0 = arith.constant 0 : i32
    %c0_i32_1 = arith.constant 0 : i32
    return %c0_i32, %c0_i32_0 : i32, i32
  }
  func.func @transform_4(%arg0: i32) -> (i32, i32) {
    %c0_i32 = arith.constant 0 : i32
    %c0_i32_0 = arith.constant 0 : i32
    %c0_i32_1 = arith.constant 0 : i32
    return %c0_i32, %c0_i32_0 : i32, i32
  }
  func.func @transform_5(%arg0: i32) -> (i32, i32) {
    %c0_i32 = arith.constant 0 : i32
    %c0_i32_0 = arith.constant 0 : i32
    return %c0_i32, %arg0 : i32, i32
  }
}

</mosaic_0001>

<llo_original>
// kernel: tpu_custom_call.1
$region0: #{tpu_custom_call.1}
  #allocation0 [shape = 'u32[]', space=smem, size = 0x4, offset = 0x4, fixed_abs, tag = 'smem constant byte address 0x4 - core index']
  #allocation1 [shape = 'u32[144,128]{1,0:T(1,128)}', space=vmem, size = 0x12000, scoped, tag = 'internal scratch']
  #allocation2 [shape = 'f32[1,1]{1,0:T(1,128)S(6)}', space=smem, size = 0x200, scoped, tag = 'scoped memory for tpu_custom_call.1']
  %s0 = inlined_call_operand.vmem [shape: f32[16,128], index: 0, kind: input, shape index: {}]
  %s1 = inlined_call_operand.vmem [shape: f32[32,16], index: 1, kind: input, shape index: {}]
  %s2 = inlined_call_operand.vmem [shape: f32[32,1], index: 2, kind: input, shape index: {}]
  %s3 = inlined_call_operand.vmem [shape: f32[32,1], index: 3, kind: input, shape index: {}]
  %s4 = inlined_call_operand.<no memory space> [shape: f32[1,1], index: 4, kind: input, shape index: {}]
  %s5 = inlined_call_operand.hbm [shape: f32[1,128], index: 5, kind: output, shape index: {}]
  %s6 = sld [smem:[#allocation0]]
  $region30: #{tpu_custom_call.1} parent=0
    _
  %s8 = ssub.s32 1, %s6
  %s9 = scalar_select 0, %s8, %s6
  %10 = sst [smem:[#allocation2]] %s4
  $region1: #{tpu_custom_call.1} parent=0
    #allocation3 [shape = 'u8[512]{0}', space=vmem, size = 0x400, scoped, tag = 'output window, operand 0, single buffered']
    #allocation4 [shape = 's32[1]{0}', space=sflag, size = 0x4, scoped, tag = 'scoped memory for tpu_custom_call.1']
    %11 = vsyncpa [#allocation4], 0
    // Predicated region
    $region2: #{tpu_custom_call.1} parent=1 // pred_check
      _
    $region3: #{tpu_custom_call.1} parent=1 // pred_check_branch
      %13 = sbr.rel (0) target = $region5
    $region4: #{tpu_custom_call.1} parent=1 // pred_region
      _
    $region5: #{tpu_custom_call.1} parent=1 // pred_fallthru
      _
    // Predicated region
    $region6: #{tpu_custom_call.1} parent=1 // pred_check
      _
    $region7: #{tpu_custom_call.1} parent=1 // pred_check_branch
      %15 = sbr.rel (0) target = $region9
    $region8: #{tpu_custom_call.1} parent=1 // pred_region
      _
    $region9: #{tpu_custom_call.1} parent=1 // pred_fallthru
      _
    // Predicated region
    $region10: #{tpu_custom_call.1} parent=1 // pred_check
      _
    $region11: #{tpu_custom_call.1} parent=1 // pred_check_branch
      %17 = sbr.rel (0) target = $region13
    $region12: #{tpu_custom_call.1} parent=1 // pred_region
      _
    $region13: #{tpu_custom_call.1} parent=1 // pred_fallthru
      _
    // Predicated region
    $region14: #{tpu_custom_call.1} parent=1 // pred_check
      _
    $region15: #{tpu_custom_call.1} parent=1 // pred_check_branch
      %19 = sbr.rel (0) target = $region17
    $region16: #{tpu_custom_call.1} parent=1 // pred_region
      _
    $region17: #{tpu_custom_call.1} parent=1 // pred_fallthru
      _
    // Predicated region
    $region18: #{tpu_custom_call.1} parent=1 // pred_check
      _
    $region19: #{tpu_custom_call.1} parent=1 // pred_check_branch
      %21 = sbr.rel (0) target = $region21
    $region20: #{tpu_custom_call.1} parent=1 // pred_region
      _
    $region21: #{tpu_custom_call.1} parent=1 // pred_fallthru
      _
    %v22 = vld [vmem:[%s1] sm:$0xff]
    %v23 = vld [vmem:[%s1 + $0x8] sm:$0xff]
    %v24 = vld [vmem:[%s1 + $0x10] sm:$0xff]
    %v25 = vld [vmem:[%s1 + $0x18] sm:$0xff]
    %v26 = vld [vmem:[%s0] sm:$0xff]
    %v27 = vld [vmem:[%s0 + $0x8] sm:$0xff]
    %v28 = vld [vmem:[%s2] sm:$0xff]
    %v29 = vld [vmem:[%s2 + $0x8] sm:$0xff]
    %v30 = vld [vmem:[%s2 + $0x10] sm:$0xff]
    %v31 = vld [vmem:[%s2 + $0x18] sm:$0xff]
    %33 = vset.pattern.permute.xlu0 0
    %34 = vperm.xlu0 %33, %v28
    %v35 = vpop.permute.xlu0 %34
    %38 = vset.pattern.permute.xlu0 0
    %39 = vperm.xlu0 %38, %v29
    %v40 = vpop.permute.xlu0 %39
    %43 = vset.pattern.permute.xlu0 0
    %44 = vperm.xlu0 %43, %v30
    %v45 = vpop.permute.xlu0 %44
    %48 = vset.pattern.permute.xlu0 0
    %49 = vperm.xlu0 %48, %v31
    %v50 = vpop.permute.xlu0 %49
    %vm52 = vcmask 130048
    %v54 = vsel %vm52, %v22, 0
    %v57 = vsel %vm52, %v23, 0
    %v60 = vsel %vm52, %v24, 0
    %v63 = vsel %vm52, %v25, 0
    %65 = vmatprep.subr.mxu0 0.0
    %66 = vmatpush1.msra.mxu0 %v26
    %67 = vmatprep.subr.mxu0 0.0
    %68 = vmatpush1.msra.mxu0 %v27
    %69 = vmatprep.subr.mxu0 0.0
    %70 = vmatpush1.msra.mxu0 0.0
    %71 = vmatprep.subr.mxu0 0.0
    %72 = vmatpush1.msra.mxu0 0.0
    %73 = vmatprep.subr.mxu0 0.0
    %74 = vmatpush1.msra.mxu0 0.0
    %75 = vmatprep.subr.mxu0 0.0
    %76 = vmatpush1.msra.mxu0 0.0
    %77 = vmatprep.subr.mxu0 0.0
    %78 = vmatpush1.msra.mxu0 0.0
    %79 = vmatprep.subr.mxu0 0.0
    %80 = vmatpush1.msra.mxu0 0.0
    %81 = vmatprep.subr.mxu0 0.0
    %82 = vmatpush1.msra.mxu0 0.0
    %83 = vmatprep.subr.mxu0 0.0
    %84 = vmatpush1.msra.mxu0 0.0
    %85 = vmatprep.subr.mxu0 0.0
    %86 = vmatpush1.msra.mxu0 0.0
    %87 = vmatprep.subr.mxu0 0.0
    %88 = vmatpush1.msra.mxu0 0.0
    %89 = vmatprep.subr.mxu0 0.0
    %90 = vmatpush1.msra.mxu0 0.0
    %91 = vmatprep.subr.mxu0 0.0
    %92 = vmatpush1.msra.mxu0 0.0
    %93 = vmatprep.subr.mxu0 0.0
    %94 = vmatpush1.msra.mxu0 0.0
    %95 = vmatprep.subr.mxu0 0.0
    %96 = vmatpush1.msra.mxu0 0.0
    %97 = vmatprep.subr.mxu0 0.0
    %98 = vmatpush1.msra.mxu0 0.0
    %99 = vmatprep.subr.mxu0 0.0
    %100 = vmatpush1.msra.mxu0 0.0
    %101 = vmatprep.subr.mxu0 0.0
    %102 = vmatpush1.msra.mxu0 0.0
    %103 = vmatprep.subr.mxu0 0.0
    %104 = vmatpush1.msra.mxu0 0.0
    %105 = vmatprep.subr.mxu0 0.0
    %106 = vmatpush1.msra.mxu0 0.0
    %107 = vmatprep.subr.mxu0 0.0
    %108 = vmatpush1.msra.mxu0 0.0
    %109 = vmatprep.subr.mxu0 0.0
    %110 = vmatpush1.msra.mxu0 0.0
    %111 = vmatprep.subr.mxu0 0.0
    %112 = vmatpush1.msra.mxu0 0.0
    %113 = vmatprep.subr.mxu0 0.0
    %114 = vmatpush1.msra.mxu0 0.0
    %115 = vmatprep.subr.mxu0 0.0
    %116 = vmatpush1.msra.mxu0 0.0
    %117 = vmatprep.subr.mxu0 0.0
    %118 = vmatpush1.msra.mxu0 0.0
    %119 = vmatprep.subr.mxu0 0.0
    %120 = vmatpush1.msra.mxu0 0.0
    %121 = vmatprep.subr.mxu0 0.0
    %122 = vmatpush1.msra.mxu0 0.0
    %123 = vmatprep.subr.mxu0 0.0
    %124 = vmatpush1.msra.mxu0 0.0
    %125 = vmatprep.subr.mxu0 0.0
    %126 = vmatpush1.msra.mxu0 0.0
    %127 = vmatprep.subr.mxu0 0.0
    %128 = vmatpush1.msra.mxu0 0.0
    %129 = vmatprep.mubr.f32.mxu0 0.0
    %130 = vmatmul.mubr.f32.gmra.mrb[0].mxu0 %v54
    %v131 = vpop.f32.mrb[0].mxu0
    %v132 = vadd.f32 %v35, %v131
    %v133 = vpop.f32.mrb[0].mxu0
    %134 = vmatprep.mubr.f32.mxu0 0.0
    %135 = vmatmul.mubr.f32.gmra.mrb[0].mxu0 %v57
    %v136 = vpop.f32.mrb[0].mxu0
    %v137 = vadd.f32 %v40, %v136
    %v138 = vpop.f32.mrb[0].mxu0
    %139 = vmatprep.mubr.f32.mxu0 0.0
    %140 = vmatmul.mubr.f32.gmra.mrb[0].mxu0 %v60
    %v141 = vpop.f32.mrb[0].mxu0
    %v142 = vadd.f32 %v45, %v141
    %v143 = vpop.f32.mrb[0].mxu0
    %144 = vmatprep.mubr.f32.mxu0 0.0
    %145 = vmatmul.mubr.f32.gmra.mrb[0].mxu0 %v63
    %v146 = vpop.f32.mrb[0].mxu0
    %v147 = vadd.f32 %v50, %v146
    %v148 = vpop.f32.mrb[0].mxu0
    %149 = vdwg.mxu0
    %v150 = vtanh.pop %v132
    %v151 = vtanh.pop %v137
    %v152 = vtanh.pop %v142
    %v153 = vtanh.pop %v147
    %v154 = vld [vmem:[%s3] sm:$0xff]
    %v155 = vld [vmem:[%s3 + $0x8] sm:$0xff]
    %v156 = vld [vmem:[%s3 + $0x10] sm:$0xff]
    %v157 = vld [vmem:[%s3 + $0x18] sm:$0xff]
    %159 = vset.pattern.permute.xlu0 0
    %160 = vperm.xlu0 %159, %v154
    %v161 = vpop.permute.xlu0 %160
    %164 = vset.pattern.permute.xlu0 0
    %165 = vperm.xlu0 %164, %v155
    %v166 = vpop.permute.xlu0 %165
    %169 = vset.pattern.permute.xlu0 0
    %170 = vperm.xlu0 %169, %v156
    %v171 = vpop.permute.xlu0 %170
    %174 = vset.pattern.permute.xlu0 0
    %175 = vperm.xlu0 %174, %v157
    %v176 = vpop.permute.xlu0 %175
    %v178 = vmul.f32 %v150, %v161
    %v179 = vmul.f32 %v151, %v166
    %v180 = vmul.f32 %v152, %v171
    %v181 = vmul.f32 %v153, %v176
    %v182 = vadd.f32 %v178, %v179
    %v183 = vadd.f32 %v182, %v180
    %v184 = vadd.f32 %v183, %v181
    %v185 = vrot.slane %v184, 4
    %v186 = vadd.f32 %v184, %v185
    %v187 = vrot.slane %v186, 2
    %v188 = vadd.f32 %v186, %v187
    %v189 = vrot.slane %v188, 1
    %v190 = vadd.f32 %v188, %v189
    %s191 = sld [smem:[#allocation2]]
    %v192 = vstv %s191
    %v193 = vadd.f32 %v190, %v192
    %194 = vst [vmem:[#allocation3] sm:$0x1] %v193
    // Predicated region
    $region22: #{tpu_custom_call.1} parent=1 // pred_check
      _
    $region23: #{tpu_custom_call.1} parent=1 // pred_check_branch
      %196 = sbr.rel (0) target = $region25
    $region24: #{tpu_custom_call.1} parent=1 // pred_region
      %s198 = ssub.s32 16, 16
      %199 = vsyncadd [#allocation4], %s198
      %s201 = sshll.u32 [#allocation3], 4
      %s202 = int_to_ptr.vmem [resolvable:$true] %s201
      %204 = dma.vmem_to_hbm [thread:$0]  %s202, 16, %s5, [#allocation4]
    $region25: #{tpu_custom_call.1} parent=1 // pred_fallthru
      _
    // Predicated region
    $region26: #{tpu_custom_call.1} parent=1 // pred_check
      _
    $region27: #{tpu_custom_call.1} parent=1 // pred_check_branch
      %206 = sbr.rel (0) target = $region29
    $region28: #{tpu_custom_call.1} parent=1 // pred_region
      %207 = dma.done [#allocation4], 16
    $region29: #{tpu_custom_call.1} parent=1 // pred_fallthru
      _
    %208 = vsyncpa [#allocation4], 1

</llo_original>
